<compile_context>
chip_gen: v5e
topology: v5e:2x2
jax: 0.10.0
libtpu: 0.0.40
codegen_flags: <defaults>
</compile_context>

<pallas_src>
import math

import jax
import jax.numpy as jnp
from jax.experimental import pallas as pl
from jax.experimental.pallas import tpu as pltpu


def _round_up(x, m):
    return ((x + m - 1) // m) * m


def _cdiv(a, b):
    return -(-a // b)


_SQRT_2_OVER_PI = 0.7978845608028654


def _gelu_tanh(x):
    # tanh-approx GELU (== nn.GELU(approximate='tanh')); tanh runs on the EUP.
    return 0.5 * x * (1.0 + jnp.tanh(_SQRT_2_OVER_PI * (x + 0.044715 * x * x * x)))


def _mlp_kernel(x_ref, w1_ref, b1_ref, w2_ref, b2_ref, o_ref, acc_ref):
    # Grid: (row tiles [parallel], hidden H tiles [arbitrary / reduction]).
    # x_ref:  (TM, D_in)      streamed row tile (same block for every H step)
    # w1_ref: (D_in, TH)      fc1 weight^T, current H block
    # b1_ref: (1, TH)         fc1 bias H block (f32)
    # w2_ref: (TH, D_out_p)   fc2 weight^T, current H block
    # b2_ref: (1, D_out_p)    fc2 bias (f32), resident
    # o_ref:  (TM, D_out_p)   written on the last H step (lane-dense)
    # acc_ref:(TM, D_out_p)   f32 accumulator scratch
    kh = pl.program_id(1)

    @pl.when(kh == 0)
    def _():
        acc_ref[...] = jnp.zeros_like(acc_ref)

    h = jnp.dot(x_ref[...], w1_ref[...], preferred_element_type=jnp.float32)  # MXU
    h = _gelu_tanh(h + b1_ref[...])                     # bias + GELU in f32 (VPU/EUP)
    h = h.astype(w2_ref.dtype)                          # re-narrow for the MXU
    acc_ref[...] += jnp.dot(h, w2_ref[...], preferred_element_type=jnp.float32)

    @pl.when(kh == pl.num_programs(1) - 1)
    def _():
        o_ref[...] = (acc_ref[...] + b2_ref[...]).astype(o_ref.dtype)


def prepare_mlp_params(w1, b1, w2, b2, *, use_bf16=True):
    """One-time weight prep hoisted out of the forward path.

    w1: [H, D_in], b1: [H], w2: [D_out, H], b2: [D_out]   (nn.Linear layout)
    Returns a dict with pre-transposed (and optionally bf16-cast) weights, with
    D_out padded up to a multiple of 128 for lane-dense output stores.
    """
    hidden, d_in = w1.shape
    d_out = w2.shape[0]
    wdt = jnp.bfloat16 if use_bf16 else jnp.float32
    d_out_p = _round_up(d_out, 128)

    w1t = jnp.asarray(w1).T.astype(wdt)                      # (D_in, H)
    w2t = jnp.asarray(w2).T.astype(wdt)                      # (H, D_out)
    b1r = jnp.asarray(b1).reshape(1, hidden).astype(jnp.float32)
    b2r = jnp.asarray(b2).reshape(1, d_out).astype(jnp.float32)
    if d_out_p != d_out:
        w2t = jnp.pad(w2t, ((0, 0), (0, d_out_p - d_out)))
        b2r = jnp.pad(b2r, ((0, 0), (0, d_out_p - d_out)))

    return dict(w1t=w1t, b1=b1r, w2t=w2t, b2=b2r, dtype=wdt,
                d_in=d_in, hidden=hidden, d_out=d_out, d_out_p=d_out_p)


def mlp_forward(x, params, *, row_block=512, hidden_block=2048, out_dtype=None):
    """Fused Mlp forward with prepared params: fc2(gelu(fc1(x))).  Dropout p=0 -> identity.

    row_block:    target row tile (512 for v6e/v7x, use 128-256 on v5e).
    hidden_block: target H tile; hidden dims larger than this (and divisible
                  into 128-multiples) are reduced over a second grid axis.
    out_dtype:    output dtype (default: x.dtype); pass bf16 for bf16 consumers.
    """
    d_in, hidden = params["d_in"], params["hidden"]
    d_out, d_out_p = params["d_out"], params["d_out_p"]
    cdt = params["dtype"]
    if out_dtype is None:
        out_dtype = x.dtype

    *lead, xd = x.shape
    assert xd == d_in, f"expected trailing dim {d_in}, got {xd}"
    m = math.prod(lead) if lead else 1
    x2 = x.reshape(m, d_in).astype(cdt)

    # Row tile: fill the MXU sublane dim, 16-row aligned for bf16 packing, and
    # aim for >= 2 grid steps so the 'parallel' axis shards across v7x's 2 TCs.
    align = 16 if cdt == jnp.bfloat16 else 8
    if m >= 2 * row_block:
        tm = row_block
    elif m > align:
        tm = min(row_block, _round_up(_cdiv(m, 2), align))
    else:
        tm = _round_up(max(m, 1), align)
    mp = _round_up(m, tm)
    if mp != m:
        x2 = jnp.pad(x2, ((0, mp - m), (0, 0)))

    # Hidden (H) tile: full H when small, otherwise a 128-multiple divisor so
    # resident weights + TM*TH activation stay inside VMEM (key on v7x 64 MiB).
    th = hidden
    if hidden_block is not None and hidden > hidden_block and hidden % 128 == 0:
        cand = (min(hidden_block, hidden) // 128) * 128
        while cand >= 128:
            if hidden % cand == 0:
                th = cand
                break
            cand -= 128
    n_h = hidden // th
    grid = (mp // tm, n_h)

    itemsize = jnp.dtype(cdt).itemsize
    out_itemsize = jnp.dtype(out_dtype).itemsize
    wbuf = 1 if n_h == 1 else 2   # weight blocks single-buffered when resident
    vmem_bytes = (
        2 * tm * d_in * itemsize                         # x tile (double-buffered)
        + wbuf * (d_in * th + th * d_out_p) * itemsize   # weight blocks
        + wbuf * th * 4 + d_out_p * 4                    # biases (f32)
        + 2 * tm * d_out_p * out_itemsize                # out tile (double-buffered)
        + tm * d_out_p * 4                               # f32 accumulator scratch
        + tm * th * (4 + itemsize)                       # hidden activation temps
    )
    vmem_limit = int(min(max(vmem_bytes * 1.35, 8 << 20), 56 << 20))

    cost = pl.CostEstimate(
        flops=2 * mp * hidden * (d_in + d_out_p),
        transcendentals=mp * hidden,
        bytes_accessed=(mp * d_in * itemsize
                        + (d_in * hidden + hidden * d_out_p) * itemsize
                        + (hidden + d_out_p) * 4
                        + mp * d_out_p * out_itemsize),
    )

    def run(single_buffer_resident):
        # Constant-index operands don't need the default 2 pipeline buffers.
        res_mode = pl.Buffered(1) if (single_buffer_resident and n_h == 1) else None
        b2_mode = pl.Buffered(1) if single_buffer_resident else None

        def spec(shape, imap, mode):
            if mode is None:
                return pl.BlockSpec(shape, imap)
            return pl.BlockSpec(shape, imap, pipeline_mode=mode)

        in_specs = [
            pl.BlockSpec((tm, d_in), lambda i, k: (i, 0)),        # streamed x rows
            spec((d_in, th), lambda i, k: (0, k), res_mode),      # fc1 W^T block
            spec((1, th), lambda i, k: (0, k), res_mode),         # fc1 bias block
            spec((th, d_out_p), lambda i, k: (k, 0), res_mode),   # fc2 W^T block
            spec((1, d_out_p), lambda i, k: (0, 0), b2_mode),     # fc2 bias (resident)
        ]
        out_specs = pl.BlockSpec((tm, d_out_p), lambda i, k: (i, 0))

        return pl.pallas_call(
            _mlp_kernel,
            out_shape=jax.ShapeDtypeStruct((mp, d_out_p), out_dtype),
            grid_spec=pltpu.PrefetchScalarGridSpec(
                num_scalar_prefetch=0,
                grid=grid,
                in_specs=in_specs,
                out_specs=out_specs,
                scratch_shapes=[pltpu.VMEM((tm, d_out_p), jnp.float32)],
            ),
            compiler_params=pltpu.CompilerParams(
                dimension_semantics=("parallel", "arbitrary"),
                vmem_limit_bytes=vmem_limit,
            ),
            cost_estimate=cost,
        )(x2, params["w1t"], params["b1"], params["w2t"], params["b2"])

    try:
        out = run(True)
    except Exception:
        # Fallback if this JAX build rejects pipeline_mode=pl.Buffered(1).
        out = run(False)

    out = out[:m, :d_out]
    return out.reshape(*lead, d_out)


def mlp(x, w1, b1, w2, b2, *, use_bf16=True, **kw):
    """Convenience wrapper: prep weights (not cached) and run the fused kernel."""
    return mlp_forward(x, prepare_mlp_params(w1, b1, w2, b2, use_bf16=use_bf16), **kw)


# ----------------------------------------------------------------------------
# Pure-JAX reference (same tanh-GELU) for correctness check
# ----------------------------------------------------------------------------
def mlp_ref(x, w1, b1, w2, b2):
    h = jnp.einsum("...i,hi->...h", x, w1) + b1
    h = _gelu_tanh(h)
    return jnp.einsum("...h,oh->...o", h, w2) + b2


if __name__ == "__main__":
    B, S = 2, 8
    in_features = 32
    hidden_features = 64
    out_features = in_features          # Mlp default: out_features = in_features

    key = jax.random.PRNGKey(0)
    kx, k1, kb1, k2, kb2, kx2 = jax.random.split(key, 6)
    x = jax.random.normal(kx, (B, S, in_features), dtype=jnp.float32)

    # nn.Linear-style uniform(-1/sqrt(fan_in), 1/sqrt(fan_in)) init (synthetic).
    lim1 = 1.0 / math.sqrt(in_features)
    lim2 = 1.0 / math.sqrt(hidden_features)
    w1 = jax.random.uniform(k1, (hidden_features, in_features), minval=-lim1, maxval=lim1)
    b1 = jax.random.uniform(kb1, (hidden_features,), minval=-lim1, maxval=lim1)
    w2 = jax.random.uniform(k2, (out_features, hidden_features), minval=-lim2, maxval=lim2)
    b2 = jax.random.uniform(kb2, (out_features,), minval=-lim2, maxval=lim2)

    ref = mlp_ref(x, w1, b1, w2, b2)

    # 1) exact f32-operand path.
    out_f32 = jax.block_until_ready(mlp(x, w1, b1, w2, b2, use_bf16=False))
    assert out_f32.shape == (B, S, out_features)
    assert jnp.allclose(out_f32, ref, rtol=3e-3, atol=1e-5), "f32 mismatch vs reference"

    # 2) default bf16-operand / f32-accumulate path with hoisted weight prep.
    params = prepare_mlp_params(w1, b1, w2, b2)          # prepared once, reused below
    out_bf = jax.block_until_ready(mlp_forward(x, params))
    assert out_bf.shape == (B, S, out_features)
    assert jnp.allclose(out_bf, ref, rtol=5e-2, atol=2e-2), "bf16 mismatch vs reference"

    # 3) multi-row-tile grid with row padding (M = 300 -> padded row tiles).
    xb = jax.random.normal(kx2, (3, 100, in_features), dtype=jnp.float32)
    out_b = jax.block_until_ready(mlp_forward(xb, params, row_block=128))
    ref_b = mlp_ref(xb, w1, b1, w2, b2)
    assert out_b.shape == (3, 100, out_features)
    assert jnp.allclose(out_b, ref_b, rtol=5e-2, atol=2e-2), "tiled bf16 mismatch vs reference"

    # 4) hidden-dimension (H) tiled reduction path: H=256 split into 2 blocks of 128.
    d_in2, hid2, d_out2 = 64, 256, 64
    k3, kb3, k4, kb4, kx3 = jax.random.split(jax.random.PRNGKey(1), 5)
    lim3 = 1.0 / math.sqrt(d_in2)
    lim4 = 1.0 / math.sqrt(hid2)
    w1b = jax.random.uniform(k3, (hid2, d_in2), minval=-lim3, maxval=lim3)
    b1b = jax.random.uniform(kb3, (hid2,), minval=-lim3, maxval=lim3)
    w2b = jax.random.uniform(k4, (d_out2, hid2), minval=-lim4, maxval=lim4)
    b2b = jax.random.uniform(kb4, (d_out2,), minval=-lim4, maxval=lim4)
    x3 = jax.random.normal(kx3, (4, 8, d_in2), dtype=jnp.float32)
    out_h = jax.block_until_ready(
        mlp(x3, w1b, b1b, w2b, b2b, use_bf16=False, hidden_block=128))
    ref_h = mlp_ref(x3, w1b, b1b, w2b, b2b)
    assert out_h.shape == (4, 8, d_out2)
    assert jnp.allclose(out_h, ref_h, rtol=3e-3, atol=1e-5), "H-tiled mismatch vs reference"

    # 5) bf16 output option (halves output writeback bytes).
    out_cast = jax.block_until_ready(mlp_forward(x, params, out_dtype=jnp.bfloat16))
    assert out_cast.dtype == jnp.bfloat16 and out_cast.shape == (B, S, out_features)

    print("KERNEL_OK")
</pallas_src>

<mosaic_0001>
module attributes {stable_mosaic.version = 11 : i64} {
  func.func @_mlp_kernel(%arg0: i32, %arg1: i32, %arg2: memref<8x32xf32, #tpu.memory_space<vmem>>, %arg3: memref<32x64xf32, #tpu.memory_space<vmem>>, %arg4: memref<1x64xf32, #tpu.memory_space<vmem>>, %arg5: memref<64x128xf32, #tpu.memory_space<vmem>>, %arg6: memref<1x128xf32, #tpu.memory_space<vmem>>, %arg7: memref<8x128xf32, #tpu.memory_space<vmem>>, %arg8: memref<8x128xf32, #tpu.memory_space<vmem>>) attributes {dimension_semantics = [#tpu.dimension_semantics<parallel>, #tpu.dimension_semantics<arbitrary>], iteration_bounds = array<i64: 2, 1>, scalar_prefetch = 0 : i64, scratch_operands = 1 : i64, tpu.core_type = #tpu.core_type<tc>, window_params = [{transform_indices = @transform_0, window_bounds = array<i64: 8, 32>}, {pipeline_mode = #tpu.pipeline_mode<synchronous>, transform_indices = @transform_1, window_bounds = array<i64: 32, 64>}, {pipeline_mode = #tpu.pipeline_mode<synchronous>, transform_indices = @transform_2, window_bounds = array<i64: 1, 64>}, {pipeline_mode = #tpu.pipeline_mode<synchronous>, transform_indices = @transform_3, window_bounds = array<i64: 64, 128>}, {pipeline_mode = #tpu.pipeline_mode<synchronous>, transform_indices = @transform_4, window_bounds = array<i64: 1, 128>}, {transform_indices = @transform_5, window_bounds = array<i64: 8, 128>}]} {
    %c0_i32 = arith.constant 0 : i32
    %0 = arith.cmpi eq, %arg1, %c0_i32 : i32
    %1 = arith.extui %0 : i1 to i32
    %c0_i32_0 = arith.constant 0 : i32
    %2 = arith.cmpi ne, %1, %c0_i32_0 : i32
    scf.if %2 {
      %cst_19 = arith.constant 0.000000e+00 : f32
      %30 = vector.broadcast %cst_19 : f32 to vector<8x128xf32>
      %c0_20 = arith.constant 0 : index
      %c0_21 = arith.constant 0 : index
      %31 = vector.load %arg8[%c0_20, %c0_21] : memref<8x128xf32, #tpu.memory_space<vmem>>, vector<8x128xf32>
      tpu.vector_store %arg8[%c0_20, %c0_21], %30 {strides = array<i32>} : memref<8x128xf32, #tpu.memory_space<vmem>>, vector<8x128xf32>,
    } else {
    }
    %c0 = arith.constant 0 : index
    %c0_1 = arith.constant 0 : index
    %3 = vector.load %arg2[%c0, %c0_1] : memref<8x32xf32, #tpu.memory_space<vmem>>, vector<8x32xf32>
    %c0_2 = arith.constant 0 : index
    %c0_3 = arith.constant 0 : index
    %4 = vector.load %arg3[%c0_2, %c0_3] : memref<32x64xf32, #tpu.memory_space<vmem>>, vector<32x64xf32>
    %cst = arith.constant dense<0.000000e+00> : vector<8x64xf32>
    %5 = tpu.matmul %3, %4, %cst {dimension_numbers = #tpu.dot_dimension_numbers<[1], [0], [0], [1], [0, 0, 1, 1], [], []>} : vector<8x32xf32>, vector<32x64xf32>, vector<8x64xf32> -> vector<8x64xf32>
    %c0_4 = arith.constant 0 : index
    %c0_5 = arith.constant 0 : index
    %6 = vector.load %arg4[%c0_4, %c0_5] : memref<1x64xf32, #tpu.memory_space<vmem>>, vector<1x64xf32>
    %7 = vector.broadcast %6 : vector<1x64xf32> to vector<8x64xf32>
    %8 = arith.addf %5, %7 : vector<8x64xf32>
    %cst_6 = arith.constant 5.000000e-01 : f32
    %9 = vector.broadcast %cst_6 : f32 to vector<8x64xf32>
    %10 = arith.mulf %9, %8 : vector<8x64xf32>
    %cst_7 = arith.constant 4.471500e-02 : f32
    %11 = vector.broadcast %cst_7 : f32 to vector<8x64xf32>
    %12 = arith.mulf %11, %8 : vector<8x64xf32>
    %13 = arith.mulf %12, %8 : vector<8x64xf32>
    %14 = arith.mulf %13, %8 : vector<8x64xf32>
    %15 = arith.addf %8, %14 : vector<8x64xf32>
    %cst_8 = arith.constant 0.797884583 : f32
    %16 = vector.broadcast %cst_8 : f32 to vector<8x64xf32>
    %17 = arith.mulf %16, %15 : vector<8x64xf32>
    %18 = math.tanh %17 : vector<8x64xf32>
    %cst_9 = arith.constant 1.000000e+00 : f32
    %19 = vector.broadcast %cst_9 : f32 to vector<8x64xf32>
    %20 = arith.addf %19, %18 : vector<8x64xf32>
    %21 = arith.mulf %10, %20 : vector<8x64xf32>
    %c0_10 = arith.constant 0 : index
    %c0_11 = arith.constant 0 : index
    %22 = vector.load %arg8[%c0_10, %c0_11] : memref<8x128xf32, #tpu.memory_space<vmem>>, vector<8x128xf32>
    %c0_12 = arith.constant 0 : index
    %c0_13 = arith.constant 0 : index
    %23 = vector.load %arg5[%c0_12, %c0_13] : memref<64x128xf32, #tpu.memory_space<vmem>>, vector<64x128xf32>
    %cst_14 = arith.constant dense<0.000000e+00> : vector<8x128xf32>
    %24 = tpu.matmul %21, %23, %cst_14 {dimension_numbers = #tpu.dot_dimension_numbers<[1], [0], [0], [1], [0, 0, 1, 1], [], []>} : vector<8x64xf32>, vector<64x128xf32>, vector<8x128xf32> -> vector<8x128xf32>
    %25 = arith.addf %22, %24 : vector<8x128xf32>
    %c0_15 = arith.constant 0 : index
    %c0_16 = arith.constant 0 : index
    %26 = vector.load %arg8[%c0_15, %c0_16] : memref<8x128xf32, #tpu.memory_space<vmem>>, vector<8x128xf32>
    tpu.vector_store %arg8[%c0_15, %c0_16], %25 {strides = array<i32>} : memref<8x128xf32, #tpu.memory_space<vmem>>, vector<8x128xf32>,
    %c0_i32_17 = arith.constant 0 : i32
    %27 = arith.cmpi eq, %arg1, %c0_i32_17 : i32
    %28 = arith.extui %27 : i1 to i32
    %c0_i32_18 = arith.constant 0 : i32
    %29 = arith.cmpi ne, %28, %c0_i32_18 : i32
    scf.if %29 {
      %c0_19 = arith.constant 0 : index
      %c0_20 = arith.constant 0 : index
      %30 = vector.load %arg8[%c0_19, %c0_20] : memref<8x128xf32, #tpu.memory_space<vmem>>, vector<8x128xf32>
      %c0_21 = arith.constant 0 : index
      %c0_22 = arith.constant 0 : index
      %31 = vector.load %arg6[%c0_21, %c0_22] : memref<1x128xf32, #tpu.memory_space<vmem>>, vector<1x128xf32>
      %32 = vector.broadcast %31 : vector<1x128xf32> to vector<8x128xf32>
      %33 = arith.addf %30, %32 : vector<8x128xf32>
      %c0_23 = arith.constant 0 : index
      %c0_24 = arith.constant 0 : index
      %34 = vector.load %arg7[%c0_23, %c0_24] : memref<8x128xf32, #tpu.memory_space<vmem>>, vector<8x128xf32>
      tpu.vector_store %arg7[%c0_23, %c0_24], %33 {strides = array<i32>} : memref<8x128xf32, #tpu.memory_space<vmem>>, vector<8x128xf32>,
    } else {
    }
    return
  }
  func.func @transform_0(%arg0: i32, %arg1: i32) -> (i32, i32) {
    %c0_i32 = arith.constant 0 : i32
    %c0_i32_0 = arith.constant 0 : i32
    return %arg0, %c0_i32 : i32, i32
  }
  func.func @transform_1(%arg0: i32, %arg1: i32) -> (i32, i32) {
    %c0_i32 = arith.constant 0 : i32
    %c0_i32_0 = arith.constant 0 : i32
    return %c0_i32, %arg1 : i32, i32
  }
  func.func @transform_2(%arg0: i32, %arg1: i32) -> (i32, i32) {
    %c0_i32 = arith.constant 0 : i32
    %c0_i32_0 = arith.constant 0 : i32
    return %c0_i32, %arg1 : i32, i32
  }
  func.func @transform_3(%arg0: i32, %arg1: i32) -> (i32, i32) {
    %c0_i32 = arith.constant 0 : i32
    %c0_i32_0 = arith.constant 0 : i32
    return %arg1, %c0_i32 : i32, i32
  }
  func.func @transform_4(%arg0: i32, %arg1: i32) -> (i32, i32) {
    %c0_i32 = arith.constant 0 : i32
    %c0_i32_0 = arith.constant 0 : i32
    %c0_i32_1 = arith.constant 0 : i32
    return %c0_i32, %c0_i32_0 : i32, i32
  }
  func.func @transform_5(%arg0: i32, %arg1: i32) -> (i32, i32) {
    %c0_i32 = arith.constant 0 : i32
    %c0_i32_0 = arith.constant 0 : i32
    return %arg0, %c0_i32 : i32, i32
  }
}

module attributes {stable_mosaic.version = 11 : i64} {
  func.func @_mlp_kernel(%arg0: i32, %arg1: i32, %arg2: memref<8x32xf32, #tpu.memory_space<vmem>>, %arg3: memref<32x64xf32, #tpu.memory_space<vmem>>, %arg4: memref<1x64xf32, #tpu.memory_space<vmem>>, %arg5: memref<64x128xf32, #tpu.memory_space<vmem>>, %arg6: memref<1x128xf32, #tpu.memory_space<vmem>>, %arg7: memref<8x128xf32, #tpu.memory_space<vmem>>, %arg8: memref<8x128xf32, #tpu.memory_space<vmem>>) attributes {dimension_semantics = [#tpu.dimension_semantics<parallel>, #tpu.dimension_semantics<arbitrary>], iteration_bounds = array<i64: 2, 1>, scalar_prefetch = 0 : i64, scratch_operands = 1 : i64, tpu.core_type = #tpu.core_type<tc>, window_params = [{transform_indices = @transform_0, window_bounds = array<i64: 8, 32>}, {transform_indices = @transform_1, window_bounds = array<i64: 32, 64>}, {transform_indices = @transform_2, window_bounds = array<i64: 1, 64>}, {transform_indices = @transform_3, window_bounds = array<i64: 64, 128>}, {pipeline_mode = #tpu.pipeline_mode<synchronous>, transform_indices = @transform_4, window_bounds = array<i64: 1, 128>}, {transform_indices = @transform_5, window_bounds = array<i64: 8, 128>}]} {
    %c0_i32 = arith.constant 0 : i32
    %0 = arith.cmpi eq, %arg1, %c0_i32 : i32
    %1 = arith.extui %0 : i1 to i32
    %c0_i32_0 = arith.constant 0 : i32
    %2 = arith.cmpi ne, %1, %c0_i32_0 : i32
    scf.if %2 {
      %cst_19 = arith.constant 0.000000e+00 : f32
      %30 = vector.broadcast %cst_19 : f32 to vector<8x128xf32>
      %c0_20 = arith.constant 0 : index
      %c0_21 = arith.constant 0 : index
      %31 = vector.load %arg8[%c0_20, %c0_21] : memref<8x128xf32, #tpu.memory_space<vmem>>, vector<8x128xf32>
      tpu.vector_store %arg8[%c0_20, %c0_21], %30 {strides = array<i32>} : memref<8x128xf32, #tpu.memory_space<vmem>>, vector<8x128xf32>,
    } else {
    }
    %c0 = arith.constant 0 : index
    %c0_1 = arith.constant 0 : index
    %3 = vector.load %arg2[%c0, %c0_1] : memref<8x32xf32, #tpu.memory_space<vmem>>, vector<8x32xf32>
    %c0_2 = arith.constant 0 : index
    %c0_3 = arith.constant 0 : index
    %4 = vector.load %arg3[%c0_2, %c0_3] : memref<32x64xf32, #tpu.memory_space<vmem>>, vector<32x64xf32>
    %cst = arith.constant dense<0.000000e+00> : vector<8x64xf32>
    %5 = tpu.matmul %3, %4, %cst {dimension_numbers = #tpu.dot_dimension_numbers<[1], [0], [0], [1], [0, 0, 1, 1], [], []>} : vector<8x32xf32>, vector<32x64xf32>, vector<8x64xf32> -> vector<8x64xf32>
    %c0_4 = arith.constant 0 : index
    %c0_5 = arith.constant 0 : index
    %6 = vector.load %arg4[%c0_4, %c0_5] : memref<1x64xf32, #tpu.memory_space<vmem>>, vector<1x64xf32>
    %7 = vector.broadcast %6 : vector<1x64xf32> to vector<8x64xf32>
    %8 = arith.addf %5, %7 : vector<8x64xf32>
    %cst_6 = arith.constant 5.000000e-01 : f32
    %9 = vector.broadcast %cst_6 : f32 to vector<8x64xf32>
    %10 = arith.mulf %9, %8 : vector<8x64xf32>
    %cst_7 = arith.constant 4.471500e-02 : f32
    %11 = vector.broadcast %cst_7 : f32 to vector<8x64xf32>
    %12 = arith.mulf %11, %8 : vector<8x64xf32>
    %13 = arith.mulf %12, %8 : vector<8x64xf32>
    %14 = arith.mulf %13, %8 : vector<8x64xf32>
    %15 = arith.addf %8, %14 : vector<8x64xf32>
    %cst_8 = arith.constant 0.797884583 : f32
    %16 = vector.broadcast %cst_8 : f32 to vector<8x64xf32>
    %17 = arith.mulf %16, %15 : vector<8x64xf32>
    %18 = math.tanh %17 : vector<8x64xf32>
    %cst_9 = arith.constant 1.000000e+00 : f32
    %19 = vector.broadcast %cst_9 : f32 to vector<8x64xf32>
    %20 = arith.addf %19, %18 : vector<8x64xf32>
    %21 = arith.mulf %10, %20 : vector<8x64xf32>
    %c0_10 = arith.constant 0 : index
    %c0_11 = arith.constant 0 : index
    %22 = vector.load %arg8[%c0_10, %c0_11] : memref<8x128xf32, #tpu.memory_space<vmem>>, vector<8x128xf32>
    %c0_12 = arith.constant 0 : index
    %c0_13 = arith.constant 0 : index
    %23 = vector.load %arg5[%c0_12, %c0_13] : memref<64x128xf32, #tpu.memory_space<vmem>>, vector<64x128xf32>
    %cst_14 = arith.constant dense<0.000000e+00> : vector<8x128xf32>
    %24 = tpu.matmul %21, %23, %cst_14 {dimension_numbers = #tpu.dot_dimension_numbers<[1], [0], [0], [1], [0, 0, 1, 1], [], []>} : vector<8x64xf32>, vector<64x128xf32>, vector<8x128xf32> -> vector<8x128xf32>
    %25 = arith.addf %22, %24 : vector<8x128xf32>
    %c0_15 = arith.constant 0 : index
    %c0_16 = arith.constant 0 : index
    %26 = vector.load %arg8[%c0_15, %c0_16] : memref<8x128xf32, #tpu.memory_space<vmem>>, vector<8x128xf32>
    tpu.vector_store %arg8[%c0_15, %c0_16], %25 {strides = array<i32>} : memref<8x128xf32, #tpu.memory_space<vmem>>, vector<8x128xf32>,
    %c0_i32_17 = arith.constant 0 : i32
    %27 = arith.cmpi eq, %arg1, %c0_i32_17 : i32
    %28 = arith.extui %27 : i1 to i32
    %c0_i32_18 = arith.constant 0 : i32
    %29 = arith.cmpi ne, %28, %c0_i32_18 : i32
    scf.if %29 {
      %c0_19 = arith.constant 0 : index
      %c0_20 = arith.constant 0 : index
      %30 = vector.load %arg8[%c0_19, %c0_20] : memref<8x128xf32, #tpu.memory_space<vmem>>, vector<8x128xf32>
      %c0_21 = arith.constant 0 : index
      %c0_22 = arith.constant 0 : index
      %31 = vector.load %arg6[%c0_21, %c0_22] : memref<1x128xf32, #tpu.memory_space<vmem>>, vector<1x128xf32>
      %32 = vector.broadcast %31 : vector<1x128xf32> to vector<8x128xf32>
      %33 = arith.addf %30, %32 : vector<8x128xf32>
      %c0_23 = arith.constant 0 : index
      %c0_24 = arith.constant 0 : index
      %34 = vector.load %arg7[%c0_23, %c0_24] : memref<8x128xf32, #tpu.memory_space<vmem>>, vector<8x128xf32>
      tpu.vector_store %arg7[%c0_23, %c0_24], %33 {strides = array<i32>} : memref<8x128xf32, #tpu.memory_space<vmem>>, vector<8x128xf32>,
    } else {
    }
    return
  }
  func.func @transform_0(%arg0: i32, %arg1: i32) -> (i32, i32) {
    %c0_i32 = arith.constant 0 : i32
    %c0_i32_0 = arith.constant 0 : i32
    return %arg0, %c0_i32 : i32, i32
  }
  func.func @transform_1(%arg0: i32, %arg1: i32) -> (i32, i32) {
    %c0_i32 = arith.constant 0 : i32
    %c0_i32_0 = arith.constant 0 : i32
    return %c0_i32, %arg1 : i32, i32
  }
  func.func @transform_2(%arg0: i32, %arg1: i32) -> (i32, i32) {
    %c0_i32 = arith.constant 0 : i32
    %c0_i32_0 = arith.constant 0 : i32
    return %c0_i32, %arg1 : i32, i32
  }
  func.func @transform_3(%arg0: i32, %arg1: i32) -> (i32, i32) {
    %c0_i32 = arith.constant 0 : i32
    %c0_i32_0 = arith.constant 0 : i32
    return %arg1, %c0_i32 : i32, i32
  }
  func.func @transform_4(%arg0: i32, %arg1: i32) -> (i32, i32) {
    %c0_i32 = arith.constant 0 : i32
    %c0_i32_0 = arith.constant 0 : i32
    %c0_i32_1 = arith.constant 0 : i32
    return %c0_i32, %c0_i32_0 : i32, i32
  }
  func.func @transform_5(%arg0: i32, %arg1: i32) -> (i32, i32) {
    %c0_i32 = arith.constant 0 : i32
    %c0_i32_0 = arith.constant 0 : i32
    return %arg0, %c0_i32 : i32, i32
  }
}

</mosaic_0001>

<llo_original>
// kernel: tpu_custom_call.1
$region0: #{tpu_custom_call.1}
  #allocation0 [shape = 'u32[]', space=smem, size = 0x4, offset = 0x4, fixed_abs, tag = 'smem constant byte address 0x4 - core index']
  #allocation1 [shape = 'u32[72,128]{1,0:T(1,128)}', space=vmem, size = 0x9000, scoped, tag = 'internal scratch']
  #allocation2 [shape = 'f32[8,128]{1,0:T(8,128)}', space=vmem, size = 0x1000, scoped, tag = 'scratch operand']
  %s0 = inlined_call_operand.hbm [shape: f32[16,32], index: 0, kind: input, shape index: {}]
  %s1 = inlined_call_operand.hbm [shape: f32[32,64], index: 1, kind: input, shape index: {}]
  %s2 = inlined_call_operand.vmem [shape: f32[1,64], index: 2, kind: input, shape index: {}]
  %s3 = inlined_call_operand.hbm [shape: f32[64,128], index: 3, kind: input, shape index: {}]
  %s4 = inlined_call_operand.vmem [shape: f32[1,128], index: 4, kind: input, shape index: {}]
  %s5 = inlined_call_operand.hbm [shape: f32[16,128], index: 5, kind: output, shape index: {}]
  %s6 = sld [smem:[#allocation0]]
  $region73: #{tpu_custom_call.1} parent=0
    _
  %s8 = ssub.s32 1, %s6
  %s9 = scalar_select 0, %s8, %s6
  $region1: #{tpu_custom_call.1} parent=0
    #allocation3 [shape = 'u8[8192]{0}', space=vmem, size = 0x2000, scoped, tag = 'input window, operand 0']
    #allocation4 [shape = 's32[2]{0}', space=sflag, size = 0x8, scoped, tag = 'scoped memory for tpu_custom_call.1']
    #allocation5 [shape = 's32[2]{0}', space=sflag, size = 0x8, scoped, tag = 'scoped memory for tpu_custom_call.1']
    #allocation6 [shape = 'u8[16384]{0}', space=vmem, size = 0x4000, scoped, tag = 'input window, operand 1, single buffered']
    #allocation7 [shape = 's32[1]{0}', space=sflag, size = 0x4, scoped, tag = 'scoped memory for tpu_custom_call.1']
    #allocation8 [shape = 'u8[32768]{0}', space=vmem, size = 0x8000, scoped, tag = 'input window, operand 3, single buffered']
    #allocation9 [shape = 'u8[8192]{0}', space=vmem, size = 0x2000, scoped, tag = 'output window, operand 0']
    %10 = vsyncpa [#allocation4], 0
    %s11 = scalar_lea.sflag [#allocation4], 1
    %12 = vsyncpa %s11, 0
    %13 = vsyncpa [#allocation7], 0
    %14 = vsyncpa [#allocation5], 0
    %s15 = scalar_lea.sflag [#allocation5], 1
    %16 = vsyncpa %s15, 0
    loop: start=0, step=1, limit=4
    $region2: #{tpu_custom_call.1} parent=1 // loop_pre_header
      _
    $region3: #{tpu_custom_call.1} parent=1 // loop_header
      %s18 = sphi 0, %s22
      %p19 = scmp.ge.s32.totalorder %s18, 4
      %s25 = sphi 0, %s37
      %s26 = sphi 0, %s33
      %s27 = sphi 0, %s25
      %s28 = sphi 0, %s26
      %s29 = sphi 0, %s27
      %s30 = sphi 0, %s28
      %s40 = sphi 0, %s42
      %s43 = sphi 0, %s40
      %s44 = sphi 0, %s43
      %s60 = sphi 0, %s44
      %s66 = sphi 0, %s68
      %s69 = sphi 0, %s66
      %s70 = sphi 0, %s69
      %s86 = sphi 0, %s70
      %s92 = sphi 0, %s94
      %s95 = sphi 0, %s92
      %s96 = sphi 0, %s95
      %s112 = sphi 0, %s96
      %s118 = sphi 0, %s120
      %s121 = sphi 0, %s118
      %s122 = sphi 0, %s121
      %s138 = sphi 0, %s122
      %s142 = sphi 0, %s142
      %s144 = sphi 0, %s142
      %s145 = sphi 0, %s144
      %s159 = sphi 0, %s145
      %s165 = sphi 0, %s167
      %s168 = sphi 0, %s165
      %s169 = sphi 0, %s168
      %s185 = sphi 0, %s169
    $region4: #{tpu_custom_call.1} parent=1 // loop_header_branch
      %21 = sbr.rel (%p19) target = $region8
    $region5: #{tpu_custom_call.1} parent=1 // loop_body
      %s23 = ssub.s32 %s18, 1
      %s24 = ssub.s32 %s18, 2
      %s31 = sadd.s32 1, %s26
      %p32 = scmp.ge.s32.totalorder %s31, 1
      %s33 = scalar_select %p32, 0, %s31
      %s34 = sadd.s32 1, %s25
      %s35 = scalar_select %p32, %s34, %s25
      %p36 = scmp.ge.s32.totalorder %s35, 2
      %s37 = scalar_select %p36, 0, %s35
      %s38 = ssub.s32 %s25, %s37
      %p39 = scmp.eq.s32.totalorder %s38, 0
      %s41 = sadd.s32 %s40, 1
      %s42 = scalar_select %p39, %s40, %s41
      %p45 = pneg %p39
      %p46 = scmp.eq.s32.totalorder %s18, 1
      %p47 = por %p45, %p46
      %p48 = scmp.ne.s32.totalorder %s40, %s43
      %p49 = scmp.eq.s32.totalorder %s18, 0
      %p50 = por %p48, %p49
      %p51 = scmp.ne.s32.totalorder %s40, %s43
      %p52 = scmp.eq.s32.totalorder %s23, 1
      %p53 = por %p51, %p52
      %p54 = scmp.ne.s32.totalorder %s43, %s44
      %p55 = scmp.eq.s32.totalorder %s23, 0
      %p56 = por %p54, %p55
      %p57 = scmp.ne.s32.totalorder %s43, %s44
      %p58 = scmp.eq.s32.totalorder %s24, 1
      %p59 = por %p57, %p58
      %p61 = scmp.ne.s32.totalorder %s44, %s60
      %p62 = scmp.eq.s32.totalorder %s24, 0
      %p63 = por %p61, %p62
      %s64 = ssub.s32 %s26, %s33
      %p65 = scmp.eq.s32.totalorder %s64, 0
      %s67 = sadd.s32 %s66, 1
      %s68 = scalar_select %p65, %s66, %s67
      %p71 = pneg %p65
      %p72 = scmp.eq.s32.totalorder %s18, 1
      %p73 = por %p71, %p72
      %p74 = scmp.ne.s32.totalorder %s66, %s69
      %p75 = scmp.eq.s32.totalorder %s18, 0
      %p76 = por %p74, %p75
      %p77 = scmp.ne.s32.totalorder %s66, %s69
      %p78 = scmp.eq.s32.totalorder %s23, 1
      %p79 = por %p77, %p78
      %p80 = scmp.ne.s32.totalorder %s69, %s70
      %p81 = scmp.eq.s32.totalorder %s23, 0
      %p82 = por %p80, %p81
      %p83 = scmp.ne.s32.totalorder %s69, %s70
      %p84 = scmp.eq.s32.totalorder %s24, 1
      %p85 = por %p83, %p84
      %p87 = scmp.ne.s32.totalorder %s70, %s86
      %p88 = scmp.eq.s32.totalorder %s24, 0
      %p89 = por %p87, %p88
      %s90 = ssub.s32 %s26, %s33
      %p91 = scmp.eq.s32.totalorder %s90, 0
      %s93 = sadd.s32 %s92, 1
      %s94 = scalar_select %p91, %s92, %s93
      %p97 = pneg %p91
      %p98 = scmp.eq.s32.totalorder %s18, 1
      %p99 = por %p97, %p98
      %p100 = scmp.ne.s32.totalorder %s92, %s95
      %p101 = scmp.eq.s32.totalorder %s18, 0
      %p102 = por %p100, %p101
      %p103 = scmp.ne.s32.totalorder %s92, %s95
      %p104 = scmp.eq.s32.totalorder %s23, 1
      %p105 = por %p103, %p104
      %p106 = scmp.ne.s32.totalorder %s95, %s96
      %p107 = scmp.eq.s32.totalorder %s23, 0
      %p108 = por %p106, %p107
      %p109 = scmp.ne.s32.totalorder %s95, %s96
      %p110 = scmp.eq.s32.totalorder %s24, 1
      %p111 = por %p109, %p110
      %p113 = scmp.ne.s32.totalorder %s96, %s112
      %p114 = scmp.eq.s32.totalorder %s24, 0
      %p115 = por %p113, %p114
      %s116 = ssub.s32 %s26, %s33
      %p117 = scmp.eq.s32.totalorder %s116, 0
      %s119 = sadd.s32 %s118, 1
      %s120 = scalar_select %p117, %s118, %s119
      %p123 = pneg %p117
      %p124 = scmp.eq.s32.totalorder %s18, 1
      %p125 = por %p123, %p124
      %p126 = scmp.ne.s32.totalorder %s118, %s121
      %p127 = scmp.eq.s32.totalorder %s18, 0
      %p128 = por %p126, %p127
      %p129 = scmp.ne.s32.totalorder %s118, %s121
      %p130 = scmp.eq.s32.totalorder %s23, 1
      %p131 = por %p129, %p130
      %p132 = scmp.ne.s32.totalorder %s121, %s122
      %p133 = scmp.eq.s32.totalorder %s23, 0
      %p134 = por %p132, %p133
      %p135 = scmp.ne.s32.totalorder %s121, %s122
      %p136 = scmp.eq.s32.totalorder %s24, 1
      %p137 = por %p135, %p136
      %p139 = scmp.ne.s32.totalorder %s122, %s138
      %p140 = scmp.eq.s32.totalorder %s24, 0
      %p141 = por %p139, %p140
      %s143 = sadd.s32 %s142, 1
      %p146 = scmp.eq.s32.totalorder %s18, 1
      %p147 = scmp.ne.s32.totalorder %s142, %s144
      %p148 = scmp.eq.s32.totalorder %s18, 0
      %p149 = por %p147, %p148
      %p150 = scmp.ne.s32.totalorder %s142, %s144
      %p151 = scmp.eq.s32.totalorder %s23, 1
      %p152 = por %p150, %p151
      %p153 = scmp.ne.s32.totalorder %s144, %s145
      %p154 = scmp.eq.s32.totalorder %s23, 0
      %p155 = por %p153, %p154
      %p156 = scmp.ne.s32.totalorder %s144, %s145
      %p157 = scmp.eq.s32.totalorder %s24, 1
      %p158 = por %p156, %p157
      %p160 = scmp.ne.s32.totalorder %s145, %s159
      %p161 = scmp.eq.s32.totalorder %s24, 0
      %p162 = por %p160, %p161
      %s163 = ssub.s32 %s25, %s37
      %p164 = scmp.eq.s32.totalorder %s163, 0
      %s166 = sadd.s32 %s165, 1
      %s167 = scalar_select %p164, %s165, %s166
      %p170 = pneg %p164
      %p171 = scmp.eq.s32.totalorder %s18, 1
      %p172 = por %p170, %p171
      %p173 = scmp.ne.s32.totalorder %s165, %s168
      %p174 = scmp.eq.s32.totalorder %s18, 0
      %p175 = por %p173, %p174
      %p176 = scmp.ne.s32.totalorder %s165, %s168
      %p177 = scmp.eq.s32.totalorder %s23, 1
      %p178 = por %p176, %p177
      %p179 = scmp.ne.s32.totalorder %s168, %s169
      %p180 = scmp.eq.s32.totalorder %s23, 0
      %p181 = por %p179, %p180
      %p182 = scmp.ne.s32.totalorder %s168, %s169
      %p183 = scmp.eq.s32.totalorder %s24, 1
      %p184 = por %p182, %p183
      %p186 = scmp.ne.s32.totalorder %s169, %s185
      %p187 = scmp.eq.s32.totalorder %s24, 0
      %p188 = por %p186, %p187
      %p189 = scmp.le.s32.totalorder 1, %s18
      %p190 = scmp.lt.s32.totalorder %s18, 3
      %p191 = pnand %p189, %p190
      %p192 = pneg %p191
      // Predicated region
      $region9: #{tpu_custom_call.1} parent=5 // pred_check
        _
      $region10: #{tpu_custom_call.1} parent=5 // pred_check_branch
        %194 = sbr.rel (%p191) target = $region12
      $region11: #{tpu_custom_call.1} parent=5 // pred_region
        %s195 = ssub.s32 %s18, 1
        // Predicated region
        $region13: #{tpu_custom_call.1} parent=11 // pred_check
          %p196 = pneg %p82
        $region14: #{tpu_custom_call.1} parent=11 // pred_check_branch
          %198 = sbr.rel (%p196) target = $region16
        $region15: #{tpu_custom_call.1} parent=11 // pred_region
          %200 = vsyncadd [#allocation7], 0
          %s201 = smul.addr %s28, 8
          %s202 = scalar_lea.hbm %s1, %s201
          %s203 = sshll.u32 %s202, 4
          %s204 = int_to_ptr.hbm [resolvable:$true] %s203
          %s205 = sshll.u32 [#allocation6], 4
          %s206 = int_to_ptr.vmem [resolvable:$true] %s205
          %211 = dma.hbm_to_vmem [thread:$0]  %s204, 512, %s206, [#allocation7], 128, 128, 8
        $region16: #{tpu_custom_call.1} parent=11 // pred_fallthru
          _
        // Predicated region
        $region17: #{tpu_custom_call.1} parent=11 // pred_check
          %p212 = pneg %p108
        $region18: #{tpu_custom_call.1} parent=11 // pred_check_branch
          %214 = sbr.rel (%p212) target = $region20
        $region19: #{tpu_custom_call.1} parent=11 // pred_region
          %p215 = scmp.lt.s32.totalorder %s28, 0
          %s216 = scalar_select %p215, %s28, 0
          %s217 = scalar_lea.vmem %s2, %s216
        $region20: #{tpu_custom_call.1} parent=11 // pred_fallthru
          _
        // Predicated region
        $region21: #{tpu_custom_call.1} parent=11 // pred_check
          %p218 = pneg %p134
        $region22: #{tpu_custom_call.1} parent=11 // pred_check_branch
          %220 = sbr.rel (%p218) target = $region24
        $region23: #{tpu_custom_call.1} parent=11 // pred_region
          %s221 = smul.u32 8, %s28
          %223 = vsyncadd [#allocation7], 0
          %s224 = smul.addr %s221, 8
          %s225 = scalar_lea.hbm %s3, %s224
          %s226 = sshll.u32 %s225, 4
          %s227 = int_to_ptr.hbm [resolvable:$true] %s226
          %s228 = sshll.u32 [#allocation8], 4
          %s229 = int_to_ptr.vmem [resolvable:$true] %s228
          %234 = dma.hbm_to_vmem [thread:$0]  %s227, 1024, %s229, [#allocation7], 128, 128, 8
        $region24: #{tpu_custom_call.1} parent=11 // pred_fallthru
          _
        // Predicated region
        $region25: #{tpu_custom_call.1} parent=11 // pred_check
          %p235 = pneg %p155
        $region26: #{tpu_custom_call.1} parent=11 // pred_check_branch
          %237 = sbr.rel (%p235) target = $region28
        $region27: #{tpu_custom_call.1} parent=11 // pred_region
          _
        $region28: #{tpu_custom_call.1} parent=11 // pred_fallthru
          _
      $region12: #{tpu_custom_call.1} parent=5 // pred_fallthru
        _
      %p238 = scmp.lt.s32.totalorder %s18, 2
      // Predicated region
      $region29: #{tpu_custom_call.1} parent=5 // pred_check
        %p239 = pneg %p238
      $region30: #{tpu_custom_call.1} parent=5 // pred_check_branch
        %241 = sbr.rel (%p239) target = $region32
      $region31: #{tpu_custom_call.1} parent=5 // pred_region
        // Predicated region
        $region33: #{tpu_custom_call.1} parent=31 // pred_check
          %p242 = pneg %p50
        $region34: #{tpu_custom_call.1} parent=31 // pred_check_branch
          %244 = sbr.rel (%p242) target = $region36
        $region35: #{tpu_custom_call.1} parent=31 // pred_region
          %s245 = sand.u32 %s40, 1
          %s246 = scalar_lea.sflag [#allocation4], %s245
          %s247 = sand.u32 %s40, 1
          %s248 = smul.addr %s247, 8
          %s249 = scalar_lea.vmem [#allocation3], %s248
          %251 = vsyncadd %s246, 0
          %s252 = smul.addr %s25, 8
          %s253 = scalar_lea.hbm %s0, %s252
          %s255 = sshll.u32 %s253, 4
          %s256 = int_to_ptr.hbm [resolvable:$true] %s255
          %s257 = sshll.u32 %s249, 4
          %s258 = int_to_ptr.vmem [resolvable:$true] %s257
          %260 = dma.hbm_to_vmem [thread:$0]  %s256, 128, %s258, %s246
        $region36: #{tpu_custom_call.1} parent=31 // pred_fallthru
          _
      $region32: #{tpu_custom_call.1} parent=5 // pred_fallthru
        _
      %p261 = scmp.le.s32.totalorder 1, %s18
      %p262 = scmp.lt.s32.totalorder %s18, 3
      %p263 = pnand %p261, %p262
      %p264 = pneg %p263
      // Predicated region
      $region37: #{tpu_custom_call.1} parent=5 // pred_check
        _
      $region38: #{tpu_custom_call.1} parent=5 // pred_check_branch
        %266 = sbr.rel (%p263) target = $region40
      $region39: #{tpu_custom_call.1} parent=5 // pred_region
        %s267 = ssub.s32 %s18, 1
        %s268 = sand.u32 %s43, 1
        %s269 = scalar_lea.sflag [#allocation4], %s268
        %s270 = sand.u32 %s43, 1
        %s271 = smul.addr %s270, 8
        %s272 = scalar_lea.vmem [#allocation3], %s271
        // Predicated region
        $region41: #{tpu_custom_call.1} parent=39 // pred_check
          %p273 = pneg %p56
        $region42: #{tpu_custom_call.1} parent=39 // pred_check_branch
          %275 = sbr.rel (%p273) target = $region44
        $region43: #{tpu_custom_call.1} parent=39 // pred_region
          %277 = dma.done %s269, 128
        $region44: #{tpu_custom_call.1} parent=39 // pred_fallthru
          _
        // Predicated region
        $region45: #{tpu_custom_call.1} parent=39 // pred_check
          %p278 = pneg %p82
        $region46: #{tpu_custom_call.1} parent=39 // pred_check_branch
          %280 = sbr.rel (%p278) target = $region48
        $region47: #{tpu_custom_call.1} parent=39 // pred_region
          %282 = dma.done [#allocation7], 512
        $region48: #{tpu_custom_call.1} parent=39 // pred_fallthru
          _
        // Predicated region
        $region49: #{tpu_custom_call.1} parent=39 // pred_check
          %p283 = pneg %p134
        $region50: #{tpu_custom_call.1} parent=39 // pred_check_branch
          %285 = sbr.rel (%p283) target = $region52
        $region51: #{tpu_custom_call.1} parent=39 // pred_region
          %287 = dma.done [#allocation7], 1024
        $region52: #{tpu_custom_call.1} parent=39 // pred_fallthru
          _
        %s288 = sand.u32 %s43, 1
        %s289 = scalar_lea.sflag [#allocation4], %s288
        %s290 = sand.u32 %s43, 1
        %s291 = smul.addr %s290, 8
        %s292 = scalar_lea.vmem [#allocation3], %s291
        %p293 = pneg %p56
        %p294 = pneg %p53
        %p295 = pneg %p82
        %p296 = pneg %p79
        %p297 = scmp.lt.s32.totalorder %s28, 0
        %s298 = scalar_select %p297, %s28, 0
        %s299 = scalar_lea.vmem %s2, %s298
        %p300 = pneg %p108
        %p301 = pneg %p105
        %p302 = pneg %p134
        %p303 = pneg %p131
        %p304 = pneg %p155
        %p305 = pneg %p152
        %p306 = pneg %p181
        %p307 = pneg %p178
        %s308 = sand.u32 %s168, 1
        %s309 = scalar_lea.sflag [#allocation5], %s308
        %s310 = sand.u32 %s168, 1
        %s311 = smul.addr %s310, 8
        %s312 = scalar_lea.vmem [#allocation9], %s311
        %p313 = scmp.lt.s32.totalorder %s28, 0
        %s314 = scalar_select %p313, %s28, 0
        %s315 = scalar_lea.vmem %s2, %s314
        %s316 = smul.u32 8, %s28
        %p317 = scmp.eq.s32.totalorder %s28, 0
        // Predicated region
        $region53: #{tpu_custom_call.1} parent=39 // pred_check
          %p318 = pneg %p317
        $region54: #{tpu_custom_call.1} parent=39 // pred_check_branch
          %320 = sbr.rel (%p318) target = $region56
        $region55: #{tpu_custom_call.1} parent=39 // pred_region
          %321 = vst [vmem:[#allocation2] sm:$0xff] 0.0
        $region56: #{tpu_custom_call.1} parent=39 // pred_fallthru
          _
        %v322 = vld [vmem:[%s272] sm:$0xff]
        %v323 = vld [vmem:[#allocation6] sm:$0xff]
        %v324 = vld [vmem:[#allocation6 + $0x8] sm:$0xff]
        %v325 = vld [vmem:[#allocation6 + $0x10] sm:$0xff]
        %v326 = vld [vmem:[#allocation6 + $0x18] sm:$0xff]
        %v327 = vld [vmem:[%s315] sm:$0x1]
        %v329 = vperm.slane %v327, 0
        %vm331 = vcmask 261120
        %v333 = vsel %vm331, %v322, 0
        %335 = vmatpush.msra.mxu0 0.0
        %336 = vmatpush.msra.mxu0 0.0
        %337 = vmatpush.msra.mxu0 0.0
        %338 = vmatpush.msra.mxu0 0.0
        %339 = vmatpush.msra.mxu0 0.0
        %340 = vmatpush.msra.mxu0 0.0
        %341 = vmatpush.msra.mxu0 0.0
        %342 = vmatpush.msra.mxu0 0.0
        %343 = vmatpush.msra.mxu0 0.0
        %344 = vmatpush.msra.mxu0 0.0
        %345 = vmatpush.msra.mxu0 0.0
        %346 = vmatpush.msra.mxu0 0.0
        %347 = vmatpush.msra.mxu0 %v326
        %348 = vmatpush.msra.mxu0 %v325
        %349 = vmatpush.msra.mxu0 %v324
        %350 = vmatpush.msra.mxu0 %v323
        %351 = vmatmul.f32.gmra.mxu0 %v333
        %v352 = vpop.f32.mrf.mxu0
        %v353 = vadd.f32 %v329, %v352
        %354 = vdwg.mxu0
        %v355 = vmul.f32 %v353, 0.5
        %v356 = vmul.f32 %v353, 0.044715
        %v357 = vmul.f32 %v356, %v353
        %v358 = vmul.f32 %v357, %v353
        %v359 = vadd.f32 %v353, %v358
        %v360 = vmul.f32 %v359, 0.7978846
        %v361 = vtanh.pop %v360
        %v362 = vadd.f32 %v361, 1.0
        %v363 = vmul.f32 %v355, %v362
        %v364 = vld [vmem:[#allocation2] sm:$0xff]
        %v365 = vld [vmem:[#allocation8] sm:$0xff]
        %v366 = vld [vmem:[#allocation8 + $0x8] sm:$0xff]
        %v367 = vld [vmem:[#allocation8 + $0x10] sm:$0xff]
        %v368 = vld [vmem:[#allocation8 + $0x18] sm:$0xff]
        %v369 = vld [vmem:[#allocation8 + $0x20] sm:$0xff]
        %v370 = vld [vmem:[#allocation8 + $0x28] sm:$0xff]
        %v371 = vld [vmem:[#allocation8 + $0x30] sm:$0xff]
        %v372 = vld [vmem:[#allocation8 + $0x38] sm:$0xff]
        %vm373 = vcmask 523264
        %v375 = vsel %vm373, %v363, 0
        %377 = vmatpush.msra.mxu0 0.0
        %378 = vmatpush.msra.mxu0 0.0
        %379 = vmatpush.msra.mxu0 0.0
        %380 = vmatpush.msra.mxu0 0.0
        %381 = vmatpush.msra.mxu0 0.0
        %382 = vmatpush.msra.mxu0 0.0
        %383 = vmatpush.msra.mxu0 0.0
        %384 = vmatpush.msra.mxu0 0.0
        %385 = vmatpush.msra.mxu0 %v372
        %386 = vmatpush.msra.mxu0 %v371
        %387 = vmatpush.msra.mxu0 %v370
        %388 = vmatpush.msra.mxu0 %v369
        %389 = vmatpush.msra.mxu0 %v368
        %390 = vmatpush.msra.mxu0 %v367
        %391 = vmatpush.msra.mxu0 %v366
        %392 = vmatpush.msra.mxu0 %v365
        %393 = vmatmul.f32.gmra.mxu0 %v375
        %v394 = vpop.f32.mrf.mxu0
        %v395 = vadd.f32 0.0, %v394
        %396 = vdwg.mxu0
        %v397 = vadd.f32 %v364, %v395
        %398 = vst [vmem:[#allocation2] sm:$0xff] %v397
        // Predicated region
        $region57: #{tpu_custom_call.1} parent=39 // pred_check
          %p399 = pneg %p317
        $region58: #{tpu_custom_call.1} parent=39 // pred_check_branch
          %401 = sbr.rel (%p399) target = $region60
        $region59: #{tpu_custom_call.1} parent=39 // pred_region
          %v402 = vld [vmem:[#allocation2] sm:$0xff]
          %v403 = vld [vmem:[%s4] sm:$0x1]
          %v405 = vperm.slane %v403, 0
          %v407 = vadd.f32 %v402, %v405
          %408 = vst [vmem:[%s312] sm:$0xff] %v407
        $region60: #{tpu_custom_call.1} parent=39 // pred_fallthru
          _
        %s409 = sand.u32 %s168, 1
        %s410 = scalar_lea.sflag [#allocation5], %s409
        %s411 = sand.u32 %s168, 1
        %s412 = smul.addr %s411, 8
        %s413 = scalar_lea.vmem [#allocation9], %s412
        // Predicated region
        $region61: #{tpu_custom_call.1} parent=39 // pred_check
          %p414 = pneg %p178
        $region62: #{tpu_custom_call.1} parent=39 // pred_check_branch
          %416 = sbr.rel (%p414) target = $region64
        $region63: #{tpu_custom_call.1} parent=39 // pred_region
          %418 = vsyncadd %s410, 0
          %s419 = smul.addr %s27, 8
          %s420 = scalar_lea.hbm %s5, %s419
          %s422 = sshll.u32 %s413, 4
          %s423 = int_to_ptr.vmem [resolvable:$true] %s422
          %s424 = sshll.u32 %s420, 4
          %s425 = int_to_ptr.hbm [resolvable:$true] %s424
          %427 = dma.vmem_to_hbm [thread:$0]  %s423, 128, %s425, %s410
        $region64: #{tpu_custom_call.1} parent=39 // pred_fallthru
          _
      $region40: #{tpu_custom_call.1} parent=5 // pred_fallthru
        _
      %p428 = scmp.le.s32.totalorder 2, %s18
      // Predicated region
      $region65: #{tpu_custom_call.1} parent=5 // pred_check
        %p429 = pneg %p428
      $region66: #{tpu_custom_call.1} parent=5 // pred_check_branch
        %431 = sbr.rel (%p429) target = $region68
      $region67: #{tpu_custom_call.1} parent=5 // pred_region
        %s432 = ssub.s32 %s18, 2
        // Predicated region
        $region69: #{tpu_custom_call.1} parent=67 // pred_check
          %p433 = pneg %p184
        $region70: #{tpu_custom_call.1} parent=67 // pred_check_branch
          %435 = sbr.rel (%p433) target = $region72
        $region71: #{tpu_custom_call.1} parent=67 // pred_region
          %s436 = sand.u32 %s169, 1
          %s437 = scalar_lea.sflag [#allocation5], %s436
          %s438 = sand.u32 %s169, 1
          %s439 = smul.addr %s438, 8
          %s440 = scalar_lea.vmem [#allocation9], %s439
          %442 = dma.done %s437, 128
        $region72: #{tpu_custom_call.1} parent=67 // pred_fallthru
          _
      $region68: #{tpu_custom_call.1} parent=5 // pred_fallthru
        _
    $region6: #{tpu_custom_call.1} parent=1 // loop_footer
      %s22 = sadd.s32 1, %s18
    $region7: #{tpu_custom_call.1} parent=1 // loop_footer_branch
      %17 = sbr.rel target = $region3
    $region8: #{tpu_custom_call.1} parent=1 // loop_exit
      _
    %443 = vsyncpa [#allocation4], 1
    %s444 = scalar_lea.sflag [#allocation4], 1
    %445 = vsyncpa %s444, 1
    %446 = vsyncpa [#allocation7], 1
    %447 = vsyncpa [#allocation5], 1
    %s448 = scalar_lea.sflag [#allocation5], 1
    %449 = vsyncpa %s448, 1

// kernel: tpu_custom_call.1
$region0: #{tpu_custom_call.1}
  #allocation0 [shape = 'u32[]', space=smem, size = 0x4, offset = 0x4, fixed_abs, tag = 'smem constant byte address 0x4 - core index']
  #allocation1 [shape = 'u32[72,128]{1,0:T(1,128)}', space=vmem, size = 0x9000, scoped, tag = 'internal scratch']
  #allocation2 [shape = 'f32[8,128]{1,0:T(8,128)}', space=vmem, size = 0x1000, scoped, tag = 'scratch operand']
  %s0 = inlined_call_operand.hbm [shape: f32[16,32], index: 0, kind: input, shape index: {}]
  %s1 = inlined_call_operand.hbm [shape: f32[32,64], index: 1, kind: input, shape index: {}]
  %s2 = inlined_call_operand.vmem [shape: f32[1,64], index: 2, kind: input, shape index: {}]
  %s3 = inlined_call_operand.hbm [shape: f32[64,128], index: 3, kind: input, shape index: {}]
  %s4 = inlined_call_operand.vmem [shape: f32[1,128], index: 4, kind: input, shape index: {}]
  %s5 = inlined_call_operand.hbm [shape: f32[16,128], index: 5, kind: output, shape index: {}]
  %s6 = sld [smem:[#allocation0]]
  $region73: #{tpu_custom_call.1} parent=0
    _
  %s8 = ssub.s32 1, %s6
  %s9 = scalar_select 0, %s8, %s6
  $region1: #{tpu_custom_call.1} parent=0
    #allocation3 [shape = 'u8[8192]{0}', space=vmem, size = 0x2000, scoped, tag = 'input window, operand 0']
    #allocation4 [shape = 's32[2]{0}', space=sflag, size = 0x8, scoped, tag = 'scoped memory for tpu_custom_call.1']
    #allocation5 [shape = 's32[2]{0}', space=sflag, size = 0x8, scoped, tag = 'scoped memory for tpu_custom_call.1']
    #allocation6 [shape = 'u8[16384]{0}', space=vmem, size = 0x4000, scoped, tag = 'input window, operand 1, single buffered']
    #allocation7 [shape = 's32[1]{0}', space=sflag, size = 0x4, scoped, tag = 'scoped memory for tpu_custom_call.1']
    #allocation8 [shape = 'u8[32768]{0}', space=vmem, size = 0x8000, scoped, tag = 'input window, operand 3, single buffered']
    #allocation9 [shape = 'u8[8192]{0}', space=vmem, size = 0x2000, scoped, tag = 'output window, operand 0']
    %10 = vsyncpa [#allocation4], 0
    %s11 = scalar_lea.sflag [#allocation4], 1
    %12 = vsyncpa %s11, 0
    %13 = vsyncpa [#allocation7], 0
    %14 = vsyncpa [#allocation5], 0
    %s15 = scalar_lea.sflag [#allocation5], 1
    %16 = vsyncpa %s15, 0
    loop: start=0, step=1, limit=4
    $region2: #{tpu_custom_call.1} parent=1 // loop_pre_header
      _
    $region3: #{tpu_custom_call.1} parent=1 // loop_header
      %s18 = sphi 0, %s22
      %p19 = scmp.ge.s32.totalorder %s18, 4
      %s25 = sphi 0, %s37
      %s26 = sphi 0, %s33
      %s27 = sphi 0, %s25
      %s28 = sphi 0, %s26
      %s29 = sphi 0, %s27
      %s30 = sphi 0, %s28
      %s40 = sphi 0, %s42
      %s43 = sphi 0, %s40
      %s44 = sphi 0, %s43
      %s60 = sphi 0, %s44
      %s66 = sphi 0, %s68
      %s69 = sphi 0, %s66
      %s70 = sphi 0, %s69
      %s86 = sphi 0, %s70
      %s92 = sphi 0, %s94
      %s95 = sphi 0, %s92
      %s96 = sphi 0, %s95
      %s112 = sphi 0, %s96
      %s118 = sphi 0, %s120
      %s121 = sphi 0, %s118
      %s122 = sphi 0, %s121
      %s138 = sphi 0, %s122
      %s142 = sphi 0, %s142
      %s144 = sphi 0, %s142
      %s145 = sphi 0, %s144
      %s159 = sphi 0, %s145
      %s165 = sphi 0, %s167
      %s168 = sphi 0, %s165
      %s169 = sphi 0, %s168
      %s185 = sphi 0, %s169
    $region4: #{tpu_custom_call.1} parent=1 // loop_header_branch
      %21 = sbr.rel (%p19) target = $region8
    $region5: #{tpu_custom_call.1} parent=1 // loop_body
      %s23 = ssub.s32 %s18, 1
      %s24 = ssub.s32 %s18, 2
      %s31 = sadd.s32 1, %s26
      %p32 = scmp.ge.s32.totalorder %s31, 1
      %s33 = scalar_select %p32, 0, %s31
      %s34 = sadd.s32 1, %s25
      %s35 = scalar_select %p32, %s34, %s25
      %p36 = scmp.ge.s32.totalorder %s35, 2
      %s37 = scalar_select %p36, 0, %s35
      %s38 = ssub.s32 %s25, %s37
      %p39 = scmp.eq.s32.totalorder %s38, 0
      %s41 = sadd.s32 %s40, 1
      %s42 = scalar_select %p39, %s40, %s41
      %p45 = pneg %p39
      %p46 = scmp.eq.s32.totalorder %s18, 1
      %p47 = por %p45, %p46
      %p48 = scmp.ne.s32.totalorder %s40, %s43
      %p49 = scmp.eq.s32.totalorder %s18, 0
      %p50 = por %p48, %p49
      %p51 = scmp.ne.s32.totalorder %s40, %s43
      %p52 = scmp.eq.s32.totalorder %s23, 1
      %p53 = por %p51, %p52
      %p54 = scmp.ne.s32.totalorder %s43, %s44
      %p55 = scmp.eq.s32.totalorder %s23, 0
      %p56 = por %p54, %p55
      %p57 = scmp.ne.s32.totalorder %s43, %s44
      %p58 = scmp.eq.s32.totalorder %s24, 1
      %p59 = por %p57, %p58
      %p61 = scmp.ne.s32.totalorder %s44, %s60
      %p62 = scmp.eq.s32.totalorder %s24, 0
      %p63 = por %p61, %p62
      %s64 = ssub.s32 %s26, %s33
      %p65 = scmp.eq.s32.totalorder %s64, 0
      %s67 = sadd.s32 %s66, 1
      %s68 = scalar_select %p65, %s66, %s67
      %p71 = pneg %p65
      %p72 = scmp.eq.s32.totalorder %s18, 1
      %p73 = por %p71, %p72
      %p74 = scmp.ne.s32.totalorder %s66, %s69
      %p75 = scmp.eq.s32.totalorder %s18, 0
      %p76 = por %p74, %p75
      %p77 = scmp.ne.s32.totalorder %s66, %s69
      %p78 = scmp.eq.s32.totalorder %s23, 1
      %p79 = por %p77, %p78
      %p80 = scmp.ne.s32.totalorder %s69, %s70
      %p81 = scmp.eq.s32.totalorder %s23, 0
      %p82 = por %p80, %p81
      %p83 = scmp.ne.s32.totalorder %s69, %s70
      %p84 = scmp.eq.s32.totalorder %s24, 1
      %p85 = por %p83, %p84
      %p87 = scmp.ne.s32.totalorder %s70, %s86
      %p88 = scmp.eq.s32.totalorder %s24, 0
      %p89 = por %p87, %p88
      %s90 = ssub.s32 %s26, %s33
      %p91 = scmp.eq.s32.totalorder %s90, 0
      %s93 = sadd.s32 %s92, 1
      %s94 = scalar_select %p91, %s92, %s93
      %p97 = pneg %p91
      %p98 = scmp.eq.s32.totalorder %s18, 1
      %p99 = por %p97, %p98
      %p100 = scmp.ne.s32.totalorder %s92, %s95
      %p101 = scmp.eq.s32.totalorder %s18, 0
      %p102 = por %p100, %p101
      %p103 = scmp.ne.s32.totalorder %s92, %s95
      %p104 = scmp.eq.s32.totalorder %s23, 1
      %p105 = por %p103, %p104
      %p106 = scmp.ne.s32.totalorder %s95, %s96
      %p107 = scmp.eq.s32.totalorder %s23, 0
      %p108 = por %p106, %p107
      %p109 = scmp.ne.s32.totalorder %s95, %s96
      %p110 = scmp.eq.s32.totalorder %s24, 1
      %p111 = por %p109, %p110
      %p113 = scmp.ne.s32.totalorder %s96, %s112
      %p114 = scmp.eq.s32.totalorder %s24, 0
      %p115 = por %p113, %p114
      %s116 = ssub.s32 %s26, %s33
      %p117 = scmp.eq.s32.totalorder %s116, 0
      %s119 = sadd.s32 %s118, 1
      %s120 = scalar_select %p117, %s118, %s119
      %p123 = pneg %p117
      %p124 = scmp.eq.s32.totalorder %s18, 1
      %p125 = por %p123, %p124
      %p126 = scmp.ne.s32.totalorder %s118, %s121
      %p127 = scmp.eq.s32.totalorder %s18, 0
      %p128 = por %p126, %p127
      %p129 = scmp.ne.s32.totalorder %s118, %s121
      %p130 = scmp.eq.s32.totalorder %s23, 1
      %p131 = por %p129, %p130
      %p132 = scmp.ne.s32.totalorder %s121, %s122
      %p133 = scmp.eq.s32.totalorder %s23, 0
      %p134 = por %p132, %p133
      %p135 = scmp.ne.s32.totalorder %s121, %s122
      %p136 = scmp.eq.s32.totalorder %s24, 1
      %p137 = por %p135, %p136
      %p139 = scmp.ne.s32.totalorder %s122, %s138
      %p140 = scmp.eq.s32.totalorder %s24, 0
      %p141 = por %p139, %p140
      %s143 = sadd.s32 %s142, 1
      %p146 = scmp.eq.s32.totalorder %s18, 1
      %p147 = scmp.ne.s32.totalorder %s142, %s144
      %p148 = scmp.eq.s32.totalorder %s18, 0
      %p149 = por %p147, %p148
      %p150 = scmp.ne.s32.totalorder %s142, %s144
      %p151 = scmp.eq.s32.totalorder %s23, 1
      %p152 = por %p150, %p151
      %p153 = scmp.ne.s32.totalorder %s144, %s145
      %p154 = scmp.eq.s32.totalorder %s23, 0
      %p155 = por %p153, %p154
      %p156 = scmp.ne.s32.totalorder %s144, %s145
      %p157 = scmp.eq.s32.totalorder %s24, 1
      %p158 = por %p156, %p157
      %p160 = scmp.ne.s32.totalorder %s145, %s159
      %p161 = scmp.eq.s32.totalorder %s24, 0
      %p162 = por %p160, %p161
      %s163 = ssub.s32 %s25, %s37
      %p164 = scmp.eq.s32.totalorder %s163, 0
      %s166 = sadd.s32 %s165, 1
      %s167 = scalar_select %p164, %s165, %s166
      %p170 = pneg %p164
      %p171 = scmp.eq.s32.totalorder %s18, 1
      %p172 = por %p170, %p171
      %p173 = scmp.ne.s32.totalorder %s165, %s168
      %p174 = scmp.eq.s32.totalorder %s18, 0
      %p175 = por %p173, %p174
      %p176 = scmp.ne.s32.totalorder %s165, %s168
      %p177 = scmp.eq.s32.totalorder %s23, 1
      %p178 = por %p176, %p177
      %p179 = scmp.ne.s32.totalorder %s168, %s169
      %p180 = scmp.eq.s32.totalorder %s23, 0
      %p181 = por %p179, %p180
      %p182 = scmp.ne.s32.totalorder %s168, %s169
      %p183 = scmp.eq.s32.totalorder %s24, 1
      %p184 = por %p182, %p183
      %p186 = scmp.ne.s32.totalorder %s169, %s185
      %p187 = scmp.eq.s32.totalorder %s24, 0
      %p188 = por %p186, %p187
      %p189 = scmp.le.s32.totalorder 1, %s18
      %p190 = scmp.lt.s32.totalorder %s18, 3
      %p191 = pnand %p189, %p190
      %p192 = pneg %p191
      // Predicated region
      $region9: #{tpu_custom_call.1} parent=5 // pred_check
        _
      $region10: #{tpu_custom_call.1} parent=5 // pred_check_branch
        %194 = sbr.rel (%p191) target = $region12
      $region11: #{tpu_custom_call.1} parent=5 // pred_region
        %s195 = ssub.s32 %s18, 1
        // Predicated region
        $region13: #{tpu_custom_call.1} parent=11 // pred_check
          %p196 = pneg %p82
        $region14: #{tpu_custom_call.1} parent=11 // pred_check_branch
          %198 = sbr.rel (%p196) target = $region16
        $region15: #{tpu_custom_call.1} parent=11 // pred_region
          %200 = vsyncadd [#allocation7], 0
          %s201 = smul.addr %s28, 8
          %s202 = scalar_lea.hbm %s1, %s201
          %s203 = sshll.u32 %s202, 4
          %s204 = int_to_ptr.hbm [resolvable:$true] %s203
          %s205 = sshll.u32 [#allocation6], 4
          %s206 = int_to_ptr.vmem [resolvable:$true] %s205
          %211 = dma.hbm_to_vmem [thread:$0]  %s204, 512, %s206, [#allocation7], 128, 128, 8
        $region16: #{tpu_custom_call.1} parent=11 // pred_fallthru
          _
        // Predicated region
        $region17: #{tpu_custom_call.1} parent=11 // pred_check
          %p212 = pneg %p108
        $region18: #{tpu_custom_call.1} parent=11 // pred_check_branch
          %214 = sbr.rel (%p212) target = $region20
        $region19: #{tpu_custom_call.1} parent=11 // pred_region
          %p215 = scmp.lt.s32.totalorder %s28, 0
          %s216 = scalar_select %p215, %s28, 0
          %s217 = scalar_lea.vmem %s2, %s216
        $region20: #{tpu_custom_call.1} parent=11 // pred_fallthru
          _
        // Predicated region
        $region21: #{tpu_custom_call.1} parent=11 // pred_check
          %p218 = pneg %p134
        $region22: #{tpu_custom_call.1} parent=11 // pred_check_branch
          %220 = sbr.rel (%p218) target = $region24
        $region23: #{tpu_custom_call.1} parent=11 // pred_region
          %s221 = smul.u32 8, %s28
          %223 = vsyncadd [#allocation7], 0
          %s224 = smul.addr %s221, 8
          %s225 = scalar_lea.hbm %s3, %s224
          %s226 = sshll.u32 %s225, 4
          %s227 = int_to_ptr.hbm [resolvable:$true] %s226
          %s228 = sshll.u32 [#allocation8], 4
          %s229 = int_to_ptr.vmem [resolvable:$true] %s228
          %234 = dma.hbm_to_vmem [thread:$0]  %s227, 1024, %s229, [#allocation7], 128, 128, 8
        $region24: #{tpu_custom_call.1} parent=11 // pred_fallthru
          _
        // Predicated region
        $region25: #{tpu_custom_call.1} parent=11 // pred_check
          %p235 = pneg %p155
        $region26: #{tpu_custom_call.1} parent=11 // pred_check_branch
          %237 = sbr.rel (%p235) target = $region28
        $region27: #{tpu_custom_call.1} parent=11 // pred_region
          _
        $region28: #{tpu_custom_call.1} parent=11 // pred_fallthru
          _
      $region12: #{tpu_custom_call.1} parent=5 // pred_fallthru
        _
      %p238 = scmp.lt.s32.totalorder %s18, 2
      // Predicated region
      $region29: #{tpu_custom_call.1} parent=5 // pred_check
        %p239 = pneg %p238
      $region30: #{tpu_custom_call.1} parent=5 // pred_check_branch
        %241 = sbr.rel (%p239) target = $region32
      $region31: #{tpu_custom_call.1} parent=5 // pred_region
        // Predicated region
        $region33: #{tpu_custom_call.1} parent=31 // pred_check
          %p242 = pneg %p50
        $region34: #{tpu_custom_call.1} parent=31 // pred_check_branch
          %244 = sbr.rel (%p242) target = $region36
        $region35: #{tpu_custom_call.1} parent=31 // pred_region
          %s245 = sand.u32 %s40, 1
          %s246 = scalar_lea.sflag [#allocation4], %s245
          %s247 = sand.u32 %s40, 1
          %s248 = smul.addr %s247, 8
          %s249 = scalar_lea.vmem [#allocation3], %s248
          %251 = vsyncadd %s246, 0
          %s252 = smul.addr %s25, 8
          %s253 = scalar_lea.hbm %s0, %s252
          %s255 = sshll.u32 %s253, 4
          %s256 = int_to_ptr.hbm [resolvable:$true] %s255
          %s257 = sshll.u32 %s249, 4
          %s258 = int_to_ptr.vmem [resolvable:$true] %s257
          %260 = dma.hbm_to_vmem [thread:$0]  %s256, 128, %s258, %s246
        $region36: #{tpu_custom_call.1} parent=31 // pred_fallthru
          _
      $region32: #{tpu_custom_call.1} parent=5 // pred_fallthru
        _
      %p261 = scmp.le.s32.totalorder 1, %s18
      %p262 = scmp.lt.s32.totalorder %s18, 3
      %p263 = pnand %p261, %p262
      %p264 = pneg %p263
      // Predicated region
      $region37: #{tpu_custom_call.1} parent=5 // pred_check
        _
      $region38: #{tpu_custom_call.1} parent=5 // pred_check_branch
        %266 = sbr.rel (%p263) target = $region40
      $region39: #{tpu_custom_call.1} parent=5 // pred_region
        %s267 = ssub.s32 %s18, 1
        %s268 = sand.u32 %s43, 1
        %s269 = scalar_lea.sflag [#allocation4], %s268
        %s270 = sand.u32 %s43, 1
        %s271 = smul.addr %s270, 8
        %s272 = scalar_lea.vmem [#allocation3], %s271
        // Predicated region
        $region41: #{tpu_custom_call.1} parent=39 // pred_check
          %p273 = pneg %p56
        $region42: #{tpu_custom_call.1} parent=39 // pred_check_branch
          %275 = sbr.rel (%p273) target = $region44
        $region43: #{tpu_custom_call.1} parent=39 // pred_region
          %277 = dma.done %s269, 128
        $region44: #{tpu_custom_call.1} parent=39 // pred_fallthru
          _
        // Predicated region
        $region45: #{tpu_custom_call.1} parent=39 // pred_check
          %p278 = pneg %p82
        $region46: #{tpu_custom_call.1} parent=39 // pred_check_branch
          %280 = sbr.rel (%p278) target = $region48
        $region47: #{tpu_custom_call.1} parent=39 // pred_region
          %282 = dma.done [#allocation7], 512
        $region48: #{tpu_custom_call.1} parent=39 // pred_fallthru
          _
        // Predicated region
        $region49: #{tpu_custom_call.1} parent=39 // pred_check
          %p283 = pneg %p134
        $region50: #{tpu_custom_call.1} parent=39 // pred_check_branch
          %285 = sbr.rel (%p283) target = $region52
        $region51: #{tpu_custom_call.1} parent=39 // pred_region
          %287 = dma.done [#allocation7], 1024
        $region52: #{tpu_custom_call.1} parent=39 // pred_fallthru
          _
        %s288 = sand.u32 %s43, 1
        %s289 = scalar_lea.sflag [#allocation4], %s288
        %s290 = sand.u32 %s43, 1
        %s291 = smul.addr %s290, 8
        %s292 = scalar_lea.vmem [#allocation3], %s291
        %p293 = pneg %p56
        %p294 = pneg %p53
        %p295 = pneg %p82
        %p296 = pneg %p79
        %p297 = scmp.lt.s32.totalorder %s28, 0
        %s298 = scalar_select %p297, %s28, 0
        %s299 = scalar_lea.vmem %s2, %s298
        %p300 = pneg %p108
        %p301 = pneg %p105
        %p302 = pneg %p134
        %p303 = pneg %p131
        %p304 = pneg %p155
        %p305 = pneg %p152
        %p306 = pneg %p181
        %p307 = pneg %p178
        %s308 = sand.u32 %s168, 1
        %s309 = scalar_lea.sflag [#allocation5], %s308
        %s310 = sand.u32 %s168, 1
        %s311 = smul.addr %s310, 8
        %s312 = scalar_lea.vmem [#allocation9], %s311
        %p313 = scmp.lt.s32.totalorder %s28, 0
        %s314 = scalar_select %p313, %s28, 0
        %s315 = scalar_lea.vmem %s2, %s314
        %s316 = smul.u32 8, %s28
        %p317 = scmp.eq.s32.totalorder %s28, 0
        // Predicated region
        $region53: #{tpu_custom_call.1} parent=39 // pred_check
          %p318 = pneg %p317
        $region54: #{tpu_custom_call.1} parent=39 // pred_check_branch
          %320 = sbr.rel (%p318) target = $region56
        $region55: #{tpu_custom_call.1} parent=39 // pred_region
          %321 = vst [vmem:[#allocation2] sm:$0xff] 0.0
        $region56: #{tpu_custom_call.1} parent=39 // pred_fallthru
          _
        %v322 = vld [vmem:[%s272] sm:$0xff]
        %v323 = vld [vmem:[#allocation6] sm:$0xff]
        %v324 = vld [vmem:[#allocation6 + $0x8] sm:$0xff]
        %v325 = vld [vmem:[#allocation6 + $0x10] sm:$0xff]
        %v326 = vld [vmem:[#allocation6 + $0x18] sm:$0xff]
        %v327 = vld [vmem:[%s315] sm:$0x1]
        %v329 = vperm.slane %v327, 0
        %vm331 = vcmask 261120
        %v333 = vsel %vm331, %v322, 0
        %335 = vmatpush.msra.mxu0 0.0
        %336 = vmatpush.msra.mxu0 0.0
        %337 = vmatpush.msra.mxu0 0.0
        %338 = vmatpush.msra.mxu0 0.0
        %339 = vmatpush.msra.mxu0 0.0
        %340 = vmatpush.msra.mxu0 0.0
        %341 = vmatpush.msra.mxu0 0.0
        %342 = vmatpush.msra.mxu0 0.0
        %343 = vmatpush.msra.mxu0 0.0
        %344 = vmatpush.msra.mxu0 0.0
        %345 = vmatpush.msra.mxu0 0.0
        %346 = vmatpush.msra.mxu0 0.0
        %347 = vmatpush.msra.mxu0 %v326
        %348 = vmatpush.msra.mxu0 %v325
        %349 = vmatpush.msra.mxu0 %v324
        %350 = vmatpush.msra.mxu0 %v323
        %351 = vmatmul.f32.gmra.mxu0 %v333
        %v352 = vpop.f32.mrf.mxu0
        %v353 = vadd.f32 %v329, %v352
        %354 = vdwg.mxu0
        %v355 = vmul.f32 %v353, 0.5
        %v356 = vmul.f32 %v353, 0.044715
        %v357 = vmul.f32 %v356, %v353
        %v358 = vmul.f32 %v357, %v353
        %v359 = vadd.f32 %v353, %v358
        %v360 = vmul.f32 %v359, 0.7978846
        %v361 = vtanh.pop %v360
        %v362 = vadd.f32 %v361, 1.0
        %v363 = vmul.f32 %v355, %v362
        %v364 = vld [vmem:[#allocation2] sm:$0xff]
        %v365 = vld [vmem:[#allocation8] sm:$0xff]
        %v366 = vld [vmem:[#allocation8 + $0x8] sm:$0xff]
        %v367 = vld [vmem:[#allocation8 + $0x10] sm:$0xff]
        %v368 = vld [vmem:[#allocation8 + $0x18] sm:$0xff]
        %v369 = vld [vmem:[#allocation8 + $0x20] sm:$0xff]
        %v370 = vld [vmem:[#allocation8 + $0x28] sm:$0xff]
        %v371 = vld [vmem:[#allocation8 + $0x30] sm:$0xff]
        %v372 = vld [vmem:[#allocation8 + $0x38] sm:$0xff]
        %vm373 = vcmask 523264
        %v375 = vsel %vm373, %v363, 0
        %377 = vmatpush.msra.mxu0 0.0
        %378 = vmatpush.msra.mxu0 0.0
        %379 = vmatpush.msra.mxu0 0.0
        %380 = vmatpush.msra.mxu0 0.0
        %381 = vmatpush.msra.mxu0 0.0
        %382 = vmatpush.msra.mxu0 0.0
        %383 = vmatpush.msra.mxu0 0.0
        %384 = vmatpush.msra.mxu0 0.0
        %385 = vmatpush.msra.mxu0 %v372
        %386 = vmatpush.msra.mxu0 %v371
        %387 = vmatpush.msra.mxu0 %v370
        %388 = vmatpush.msra.mxu0 %v369
        %389 = vmatpush.msra.mxu0 %v368
        %390 = vmatpush.msra.mxu0 %v367
        %391 = vmatpush.msra.mxu0 %v366
        %392 = vmatpush.msra.mxu0 %v365
        %393 = vmatmul.f32.gmra.mxu0 %v375
        %v394 = vpop.f32.mrf.mxu0
        %v395 = vadd.f32 0.0, %v394
        %396 = vdwg.mxu0
        %v397 = vadd.f32 %v364, %v395
        %398 = vst [vmem:[#allocation2] sm:$0xff] %v397
        // Predicated region
        $region57: #{tpu_custom_call.1} parent=39 // pred_check
          %p399 = pneg %p317
        $region58: #{tpu_custom_call.1} parent=39 // pred_check_branch
          %401 = sbr.rel (%p399) target = $region60
        $region59: #{tpu_custom_call.1} parent=39 // pred_region
          %v402 = vld [vmem:[#allocation2] sm:$0xff]
          %v403 = vld [vmem:[%s4] sm:$0x1]
          %v405 = vperm.slane %v403, 0
          %v407 = vadd.f32 %v402, %v405
          %408 = vst [vmem:[%s312] sm:$0xff] %v407
        $region60: #{tpu_custom_call.1} parent=39 // pred_fallthru
          _
        %s409 = sand.u32 %s168, 1
        %s410 = scalar_lea.sflag [#allocation5], %s409
        %s411 = sand.u32 %s168, 1
        %s412 = smul.addr %s411, 8
        %s413 = scalar_lea.vmem [#allocation9], %s412
        // Predicated region
        $region61: #{tpu_custom_call.1} parent=39 // pred_check
          %p414 = pneg %p178
        $region62: #{tpu_custom_call.1} parent=39 // pred_check_branch
          %416 = sbr.rel (%p414) target = $region64
        $region63: #{tpu_custom_call.1} parent=39 // pred_region
          %418 = vsyncadd %s410, 0
          %s419 = smul.addr %s27, 8
          %s420 = scalar_lea.hbm %s5, %s419
          %s422 = sshll.u32 %s413, 4
          %s423 = int_to_ptr.vmem [resolvable:$true] %s422
          %s424 = sshll.u32 %s420, 4
          %s425 = int_to_ptr.hbm [resolvable:$true] %s424
          %427 = dma.vmem_to_hbm [thread:$0]  %s423, 128, %s425, %s410
        $region64: #{tpu_custom_call.1} parent=39 // pred_fallthru
          _
      $region40: #{tpu_custom_call.1} parent=5 // pred_fallthru
        _
      %p428 = scmp.le.s32.totalorder 2, %s18
      // Predicated region
      $region65: #{tpu_custom_call.1} parent=5 // pred_check
        %p429 = pneg %p428
      $region66: #{tpu_custom_call.1} parent=5 // pred_check_branch
        %431 = sbr.rel (%p429) target = $region68
      $region67: #{tpu_custom_call.1} parent=5 // pred_region
        %s432 = ssub.s32 %s18, 2
        // Predicated region
        $region69: #{tpu_custom_call.1} parent=67 // pred_check
          %p433 = pneg %p184
        $region70: #{tpu_custom_call.1} parent=67 // pred_check_branch
          %435 = sbr.rel (%p433) target = $region72
        $region71: #{tpu_custom_call.1} parent=67 // pred_region
          %s436 = sand.u32 %s169, 1
          %s437 = scalar_lea.sflag [#allocation5], %s436
          %s438 = sand.u32 %s169, 1
          %s439 = smul.addr %s438, 8
          %s440 = scalar_lea.vmem [#allocation9], %s439
          %442 = dma.done %s437, 128
        $region72: #{tpu_custom_call.1} parent=67 // pred_fallthru
          _
      $region68: #{tpu_custom_call.1} parent=5 // pred_fallthru
        _
    $region6: #{tpu_custom_call.1} parent=1 // loop_footer
      %s22 = sadd.s32 1, %s18
    $region7: #{tpu_custom_call.1} parent=1 // loop_footer_branch
      %17 = sbr.rel target = $region3
    $region8: #{tpu_custom_call.1} parent=1 // loop_exit
      _
    %443 = vsyncpa [#allocation4], 1
    %s444 = scalar_lea.sflag [#allocation4], 1
    %445 = vsyncpa %s444, 1
    %446 = vsyncpa [#allocation7], 1
    %447 = vsyncpa [#allocation5], 1
    %s448 = scalar_lea.sflag [#allocation5], 1
    %449 = vsyncpa %s448, 1

</llo_original>
